<compile_context>
chip_gen: v7x
topology: tpu7x:2x2x1
jax: 0.10.0
libtpu: 0.0.40
codegen_flags: <defaults>
</compile_context>

<pallas_src>
import functools

import jax
import jax.numpy as jnp
from jax.experimental import pallas as pl
from jax.experimental.pallas import tpu as pltpu


def _round_up(x, m):
    return (x + m - 1) // m * m


# ---------------------------------------------------------------------------
# Parameter packing: one contiguous 2D buffer => one HBM->VMEM DMA.
# ---------------------------------------------------------------------------
def pack_params(w1, b1, w2, b2, w3, b3):
    """Pack weights/biases (stored as (in, out)) into a single f32 buffer.

    Each segment is padded to a multiple of 8 rows (sublane alignment) and to
    a common lane width; returns (packed, row_offsets).
    """
    S, H1 = w1.shape
    _, H2 = w2.shape
    _, A = w3.shape
    lanes = max(H1, H2, A)

    def seg(x):
        pad_r = _round_up(x.shape[0], 8) - x.shape[0]
        pad_c = lanes - x.shape[1]
        return jnp.pad(x.astype(jnp.float32), ((0, pad_r), (0, pad_c)))

    pieces = [seg(x) for x in (w1, b1.reshape(1, H1), w2, b2.reshape(1, H2),
                               w3, b3.reshape(1, A))]
    offsets, off = [], 0
    for p in pieces:
        offsets.append(off)
        off += p.shape[0]
    packed = jnp.concatenate(pieces, axis=0)
    return packed, tuple(offsets)


def prepare_params(raw_params):
    """raw (w1,b1,w2,b2,w3,b3,log_std) -> (packed, offsets, dims, std)."""
    w1, b1, w2, b2, w3, b3, log_std = raw_params
    packed, offsets = pack_params(w1, b1, w2, b2, w3, b3)
    dims = (w1.shape[0], w1.shape[1], w2.shape[1], w3.shape[1])
    std = jnp.exp(log_std.reshape(-1))          # (A,), computed once, not in kernel
    return packed, offsets, dims, std


# ---------------------------------------------------------------------------
# Kernel: fused 3-layer MLP (Linear->tanh->Linear->tanh->Linear) per batch tile.
# ---------------------------------------------------------------------------
def _policy_kernel(x_ref, p_ref, mean_ref, *, S, H1, H2, A, offs):
    o_w1, o_b1, o_w2, o_b2, o_w3, o_b3 = offs
    x = x_ref[...]                                                   # (TB, S)

    # Layer 1: Linear(S -> H1) + Tanh
    w1 = p_ref[o_w1:o_w1 + S, 0:H1]
    b1 = p_ref[o_b1:o_b1 + 1, 0:H1]
    h = jnp.tanh(jnp.dot(x, w1, preferred_element_type=jnp.float32) + b1)

    # Layer 2: Linear(H1 -> H2) + Tanh
    w2 = p_ref[o_w2:o_w2 + H1, 0:H2]
    b2 = p_ref[o_b2:o_b2 + 1, 0:H2]
    h = jnp.tanh(jnp.dot(h, w2, preferred_element_type=jnp.float32) + b2)

    # Mean head: Linear(H2 -> A)
    w3 = p_ref[o_w3:o_w3 + H2, 0:A]
    b3 = p_ref[o_b3:o_b3 + 1, 0:A]
    mean = jnp.dot(h, w3, preferred_element_type=jnp.float32) + b3
    mean_ref[...] = mean.astype(mean_ref.dtype)


# ---------------------------------------------------------------------------
# Wrapper: batch-tiled grid, VMEM-resident packed weights.
# ---------------------------------------------------------------------------
def policy_network_forward(state, packed, offsets, dims, std, *, tb=None):
    """state: (B, S) f32. Returns (mean (B, A), std (A,))."""
    S, H1, H2, A = dims
    B = state.shape[0]

    # Batch tile: multiple of 8 sublanes; cap keeps double-buffered tiles tiny
    # even on v7x's smaller VMEM (could go much higher for big rollouts).
    if tb is None:
        tb = min(512, _round_up(B, 8))
    tb = _round_up(tb, 8)
    b_pad = _round_up(B, tb)
    if b_pad != B:
        state = jnp.pad(state, ((0, b_pad - B), (0, 0)))
    grid = (b_pad // tb,)

    cost = pl.CostEstimate(
        flops=2 * b_pad * (S * H1 + H1 * H2 + H2 * A),
        transcendentals=b_pad * (H1 + H2),
        bytes_accessed=4 * (b_pad * S + packed.size + b_pad * A),
    )

    kernel = functools.partial(_policy_kernel,
                               S=S, H1=H1, H2=H2, A=A, offs=offsets)

    mean = pl.pallas_call(
        kernel,
        grid=grid,
        out_shape=jax.ShapeDtypeStruct((b_pad, A), jnp.float32),
        in_specs=[
            # Batch tile of the states: streams through the pipeline.
            pl.BlockSpec((tb, S), lambda i: (i, 0)),
            # Packed parameters: single DMA, constant index_map -> VMEM-resident.
            pl.BlockSpec(packed.shape, lambda i: (0, 0)),
        ],
        out_specs=pl.BlockSpec((tb, A), lambda i: (i, 0)),
        compiler_params=pltpu.CompilerParams(
            dimension_semantics=("parallel",)),
        cost_estimate=cost,
    )(state, packed)

    if b_pad != B:
        mean = mean[:B]
    # TODO(synk): for very large rollout batches, write mean into a 128-lane
    # padded slab for unmasked stores and slice outside (A=4 << 128 lanes).
    return mean, std


# ---------------------------------------------------------------------------
# Init + pure-JAX reference.
# ---------------------------------------------------------------------------
def init_params(key, state_dim, action_dim, hidden_dim=(64, 64)):
    """Deterministic synthetic init (PyTorch-style uniform fan-in bounds)."""
    ks = jax.random.split(key, 6)

    def lin(kw, kb, fan_in, fan_out):
        bound = 1.0 / jnp.sqrt(fan_in)
        w = jax.random.uniform(kw, (fan_in, fan_out), jnp.float32, -bound, bound)
        b = jax.random.uniform(kb, (1, fan_out), jnp.float32, -bound, bound)
        return w, b

    w1, b1 = lin(ks[0], ks[1], state_dim, hidden_dim[0])
    w2, b2 = lin(ks[2], ks[3], hidden_dim[0], hidden_dim[1])
    w3, b3 = lin(ks[4], ks[5], hidden_dim[1], action_dim)
    log_std = jnp.zeros((action_dim,), jnp.float32)   # nn.Parameter(zeros)
    return (w1, b1, w2, b2, w3, b3, log_std)


def reference_forward(state, raw_params):
    w1, b1, w2, b2, w3, b3, log_std = raw_params
    h = jnp.tanh(state @ w1 + b1)
    h = jnp.tanh(h @ w2 + b2)
    mean = h @ w3 + b3
    std = jnp.exp(log_std)
    return mean, std


if __name__ == "__main__":
    key = jax.random.PRNGKey(0)
    k_param, k_state = jax.random.split(key)

    batch = 8
    state_dim = 8
    action_dim = 4
    hidden_dim = (64, 64)

    raw_params = init_params(k_param, state_dim, action_dim, hidden_dim)
    state = jax.random.normal(k_state, (batch, state_dim), jnp.float32)

    packed, offsets, dims, std_cached = prepare_params(raw_params)
    mean, std = policy_network_forward(state, packed, offsets, dims, std_cached)
    jax.block_until_ready((mean, std))

    ref_mean, ref_std = reference_forward(state, raw_params)
    assert mean.shape == (batch, action_dim)
    assert std.shape == (action_dim,)
    assert jnp.allclose(mean, ref_mean, atol=1e-5, rtol=1e-5)
    assert jnp.allclose(std, ref_std, atol=1e-6, rtol=1e-6)

    print("KERNEL_OK")
</pallas_src>

<mosaic_0001>
module attributes {stable_mosaic.version = 11 : i64} {
  func.func @_policy_kernel(%arg0: i32, %arg1: memref<8x8xf32, #tpu.memory_space<vmem>>, %arg2: memref<160x64xf32, #tpu.memory_space<vmem>>, %arg3: memref<8x4xf32, #tpu.memory_space<vmem>>) attributes {dimension_semantics = [#tpu.dimension_semantics<parallel>], iteration_bounds = array<i64: 1>, scalar_prefetch = 0 : i64, scratch_operands = 0 : i64, tpu.core_type = #tpu.core_type<tc>, window_params = [{transform_indices = @transform_0, window_bounds = array<i64: 8, 8>}, {pipeline_mode = #tpu.pipeline_mode<synchronous>, transform_indices = @transform_1, window_bounds = array<i64: 160, 64>}, {transform_indices = @transform_2, window_bounds = array<i64: 8, 4>}]} {
    %c0 = arith.constant 0 : index
    %c0_0 = arith.constant 0 : index
    %0 = vector.load %arg1[%c0, %c0_0] : memref<8x8xf32, #tpu.memory_space<vmem>>, vector<8x8xf32>
    %c0_1 = arith.constant 0 : index
    %c0_2 = arith.constant 0 : index
    %1 = vector.load %arg2[%c0_1, %c0_2] : memref<160x64xf32, #tpu.memory_space<vmem>>, vector<8x64xf32>
    %c8 = arith.constant 8 : index
    %c0_3 = arith.constant 0 : index
    %2 = vector.load %arg2[%c8, %c0_3] : memref<160x64xf32, #tpu.memory_space<vmem>>, vector<1x64xf32>
    %cst = arith.constant dense<0.000000e+00> : vector<8x64xf32>
    %3 = tpu.matmul %0, %1, %cst {dimension_numbers = #tpu.dot_dimension_numbers<[1], [0], [0], [1], [0, 0, 1, 1], [], []>} : vector<8x8xf32>, vector<8x64xf32>, vector<8x64xf32> -> vector<8x64xf32>
    %4 = vector.broadcast %2 : vector<1x64xf32> to vector<8x64xf32>
    %5 = arith.addf %3, %4 : vector<8x64xf32>
    %6 = math.tanh %5 : vector<8x64xf32>
    %c16 = arith.constant 16 : index
    %c0_4 = arith.constant 0 : index
    %7 = vector.load %arg2[%c16, %c0_4] : memref<160x64xf32, #tpu.memory_space<vmem>>, vector<64x64xf32>
    %c80 = arith.constant 80 : index
    %c0_5 = arith.constant 0 : index
    %8 = vector.load %arg2[%c80, %c0_5] : memref<160x64xf32, #tpu.memory_space<vmem>>, vector<1x64xf32>
    %cst_6 = arith.constant dense<0.000000e+00> : vector<8x64xf32>
    %9 = tpu.matmul %6, %7, %cst_6 {dimension_numbers = #tpu.dot_dimension_numbers<[1], [0], [0], [1], [0, 0, 1, 1], [], []>} : vector<8x64xf32>, vector<64x64xf32>, vector<8x64xf32> -> vector<8x64xf32>
    %10 = vector.broadcast %8 : vector<1x64xf32> to vector<8x64xf32>
    %11 = arith.addf %9, %10 : vector<8x64xf32>
    %12 = math.tanh %11 : vector<8x64xf32>
    %c88 = arith.constant 88 : index
    %c0_7 = arith.constant 0 : index
    %13 = vector.load %arg2[%c88, %c0_7] : memref<160x64xf32, #tpu.memory_space<vmem>>, vector<64x4xf32>
    %c152 = arith.constant 152 : index
    %c0_8 = arith.constant 0 : index
    %14 = vector.load %arg2[%c152, %c0_8] : memref<160x64xf32, #tpu.memory_space<vmem>>, vector<1x4xf32>
    %cst_9 = arith.constant dense<0.000000e+00> : vector<8x4xf32>
    %15 = tpu.matmul %12, %13, %cst_9 {dimension_numbers = #tpu.dot_dimension_numbers<[1], [0], [0], [1], [0, 0, 1, 1], [], []>} : vector<8x64xf32>, vector<64x4xf32>, vector<8x4xf32> -> vector<8x4xf32>
    %16 = vector.broadcast %14 : vector<1x4xf32> to vector<8x4xf32>
    %17 = arith.addf %15, %16 : vector<8x4xf32>
    %c0_10 = arith.constant 0 : index
    %c0_11 = arith.constant 0 : index
    %18 = vector.load %arg3[%c0_10, %c0_11] : memref<8x4xf32, #tpu.memory_space<vmem>>, vector<8x4xf32>
    tpu.vector_store %arg3[%c0_10, %c0_11], %17 {strides = array<i32>} : memref<8x4xf32, #tpu.memory_space<vmem>>, vector<8x4xf32>,
    return
  }
  func.func @transform_0(%arg0: i32) -> (i32, i32) {
    %c0_i32 = arith.constant 0 : i32
    %c0_i32_0 = arith.constant 0 : i32
    return %arg0, %c0_i32 : i32, i32
  }
  func.func @transform_1(%arg0: i32) -> (i32, i32) {
    %c0_i32 = arith.constant 0 : i32
    %c0_i32_0 = arith.constant 0 : i32
    %c0_i32_1 = arith.constant 0 : i32
    return %c0_i32, %c0_i32_0 : i32, i32
  }
  func.func @transform_2(%arg0: i32) -> (i32, i32) {
    %c0_i32 = arith.constant 0 : i32
    %c0_i32_0 = arith.constant 0 : i32
    return %arg0, %c0_i32 : i32, i32
  }
}

</mosaic_0001>

<llo_original>
// kernel: tpu_custom_call.1
$region0: #{tpu_custom_call.1}
  #allocation0 [shape = 'u32[]', space=smem, size = 0x4, offset = 0x4, fixed_abs, tag = 'smem constant byte address 0x4 - core index']
  #allocation1 [shape = 'u32[144,128]{1,0:T(1,128)}', space=vmem, size = 0x12000, scoped, tag = 'internal scratch']
  %s0 = inlined_call_operand.vmem [shape: f32[8,8], index: 0, kind: input, shape index: {}]
  %s1 = inlined_call_operand.vmem [shape: f32[160,64], index: 1, kind: input, shape index: {}]
  %s2 = inlined_call_operand.vmem [shape: f32[8,4], index: 2, kind: output, shape index: {}]
  %s3 = sld [smem:[#allocation0]]
  $region18: #{tpu_custom_call.1} parent=0
    _
  %s5 = ssub.s32 1, %s3
  %s6 = scalar_select 0, %s5, %s3
  // Predicated region
  $region2: #{tpu_custom_call.1} parent=0 // pred_check
    _
  $region3: #{tpu_custom_call.1} parent=0 // pred_check_branch
    %8 = sbr.rel (0) target = $region5
  $region4: #{tpu_custom_call.1} parent=0 // pred_region
    _
  $region5: #{tpu_custom_call.1} parent=0 // pred_fallthru
    _
  // Predicated region
  $region6: #{tpu_custom_call.1} parent=0 // pred_check
    _
  $region7: #{tpu_custom_call.1} parent=0 // pred_check_branch
    %10 = sbr.rel (0) target = $region9
  $region8: #{tpu_custom_call.1} parent=0 // pred_region
    _
  $region9: #{tpu_custom_call.1} parent=0 // pred_fallthru
    _
  %v11 = vld [vmem:[%s0] sm:$0xff]
  %v12 = vld [vmem:[%s1] sm:$0xff]
  %v13 = vld [vmem:[%s1 + $0x8] sm:$0x1]
  %v14 = vlaneseq
  %v15 = vshrl.u32 %v14, 7
  %v16 = vsub.s32 0, %v15
  %v17 = vrot.slane %v13, %v16
  %vm18 = vcmask 64512
  %v20 = vsel %vm18, %v11, 0
  %22 = vmatprep.subr.mxu0 0.0
  %23 = vmatpush1.msra.mxu0 %v12
  %24 = vmatprep.subr.mxu0 0.0
  %25 = vmatpush1.msra.mxu0 0.0
  %26 = vmatprep.subr.mxu0 0.0
  %27 = vmatpush1.msra.mxu0 0.0
  %28 = vmatprep.subr.mxu0 0.0
  %29 = vmatpush1.msra.mxu0 0.0
  %30 = vmatprep.subr.mxu0 0.0
  %31 = vmatpush1.msra.mxu0 0.0
  %32 = vmatprep.subr.mxu0 0.0
  %33 = vmatpush1.msra.mxu0 0.0
  %34 = vmatprep.subr.mxu0 0.0
  %35 = vmatpush1.msra.mxu0 0.0
  %36 = vmatprep.subr.mxu0 0.0
  %37 = vmatpush1.msra.mxu0 0.0
  %38 = vmatprep.subr.mxu0 0.0
  %39 = vmatpush1.msra.mxu0 0.0
  %40 = vmatprep.subr.mxu0 0.0
  %41 = vmatpush1.msra.mxu0 0.0
  %42 = vmatprep.subr.mxu0 0.0
  %43 = vmatpush1.msra.mxu0 0.0
  %44 = vmatprep.subr.mxu0 0.0
  %45 = vmatpush1.msra.mxu0 0.0
  %46 = vmatprep.subr.mxu0 0.0
  %47 = vmatpush1.msra.mxu0 0.0
  %48 = vmatprep.subr.mxu0 0.0
  %49 = vmatpush1.msra.mxu0 0.0
  %50 = vmatprep.subr.mxu0 0.0
  %51 = vmatpush1.msra.mxu0 0.0
  %52 = vmatprep.subr.mxu0 0.0
  %53 = vmatpush1.msra.mxu0 0.0
  %54 = vmatprep.subr.mxu0 0.0
  %55 = vmatpush1.msra.mxu0 0.0
  %56 = vmatprep.subr.mxu0 0.0
  %57 = vmatpush1.msra.mxu0 0.0
  %58 = vmatprep.subr.mxu0 0.0
  %59 = vmatpush1.msra.mxu0 0.0
  %60 = vmatprep.subr.mxu0 0.0
  %61 = vmatpush1.msra.mxu0 0.0
  %62 = vmatprep.subr.mxu0 0.0
  %63 = vmatpush1.msra.mxu0 0.0
  %64 = vmatprep.subr.mxu0 0.0
  %65 = vmatpush1.msra.mxu0 0.0
  %66 = vmatprep.subr.mxu0 0.0
  %67 = vmatpush1.msra.mxu0 0.0
  %68 = vmatprep.subr.mxu0 0.0
  %69 = vmatpush1.msra.mxu0 0.0
  %70 = vmatprep.subr.mxu0 0.0
  %71 = vmatpush1.msra.mxu0 0.0
  %72 = vmatprep.subr.mxu0 0.0
  %73 = vmatpush1.msra.mxu0 0.0
  %74 = vmatprep.subr.mxu0 0.0
  %75 = vmatpush1.msra.mxu0 0.0
  %76 = vmatprep.subr.mxu0 0.0
  %77 = vmatpush1.msra.mxu0 0.0
  %78 = vmatprep.subr.mxu0 0.0
  %79 = vmatpush1.msra.mxu0 0.0
  %80 = vmatprep.subr.mxu0 0.0
  %81 = vmatpush1.msra.mxu0 0.0
  %82 = vmatprep.subr.mxu0 0.0
  %83 = vmatpush1.msra.mxu0 0.0
  %84 = vmatprep.subr.mxu0 0.0
  %85 = vmatpush1.msra.mxu0 0.0
  %86 = vmatprep.mubr.f32.mxu0 0.0
  %87 = vmatmul.mubr.f32.gmra.mrb[0].mxu0 %v20
  %v88 = vpop.f32.mrb[0].mxu0
  %v89 = vadd.f32 %v17, %v88
  %v90 = vpop.f32.mrb[0].mxu0
  %91 = vdwg.mxu0
  %v92 = vtanh.pop %v89
  %v93 = vld [vmem:[%s1 + $0x10] sm:$0xff]
  %v94 = vld [vmem:[%s1 + $0x18] sm:$0xff]
  %v95 = vld [vmem:[%s1 + $0x20] sm:$0xff]
  %v96 = vld [vmem:[%s1 + $0x28] sm:$0xff]
  %v97 = vld [vmem:[%s1 + $0x30] sm:$0xff]
  %v98 = vld [vmem:[%s1 + $0x38] sm:$0xff]
  %v99 = vld [vmem:[%s1 + $0x40] sm:$0xff]
  %v100 = vld [vmem:[%s1 + $0x48] sm:$0xff]
  %v101 = vld [vmem:[%s1 + $0x50] sm:$0x1]
  %v102 = vlaneseq
  %v103 = vshrl.u32 %v102, 7
  %v104 = vsub.s32 0, %v103
  %v105 = vrot.slane %v101, %v104
  %vm106 = vcmask 523264
  %v108 = vsel %vm106, %v92, 0
  %110 = vmatprep.subr.mxu0 0.0
  %111 = vmatpush1.msra.mxu0 %v93
  %112 = vmatprep.subr.mxu0 0.0
  %113 = vmatpush1.msra.mxu0 %v94
  %114 = vmatprep.subr.mxu0 0.0
  %115 = vmatpush1.msra.mxu0 %v95
  %116 = vmatprep.subr.mxu0 0.0
  %117 = vmatpush1.msra.mxu0 %v96
  %118 = vmatprep.subr.mxu0 0.0
  %119 = vmatpush1.msra.mxu0 %v97
  %120 = vmatprep.subr.mxu0 0.0
  %121 = vmatpush1.msra.mxu0 %v98
  %122 = vmatprep.subr.mxu0 0.0
  %123 = vmatpush1.msra.mxu0 %v99
  %124 = vmatprep.subr.mxu0 0.0
  %125 = vmatpush1.msra.mxu0 %v100
  %126 = vmatprep.subr.mxu0 0.0
  %127 = vmatpush1.msra.mxu0 0.0
  %128 = vmatprep.subr.mxu0 0.0
  %129 = vmatpush1.msra.mxu0 0.0
  %130 = vmatprep.subr.mxu0 0.0
  %131 = vmatpush1.msra.mxu0 0.0
  %132 = vmatprep.subr.mxu0 0.0
  %133 = vmatpush1.msra.mxu0 0.0
  %134 = vmatprep.subr.mxu0 0.0
  %135 = vmatpush1.msra.mxu0 0.0
  %136 = vmatprep.subr.mxu0 0.0
  %137 = vmatpush1.msra.mxu0 0.0
  %138 = vmatprep.subr.mxu0 0.0
  %139 = vmatpush1.msra.mxu0 0.0
  %140 = vmatprep.subr.mxu0 0.0
  %141 = vmatpush1.msra.mxu0 0.0
  %142 = vmatprep.subr.mxu0 0.0
  %143 = vmatpush1.msra.mxu0 0.0
  %144 = vmatprep.subr.mxu0 0.0
  %145 = vmatpush1.msra.mxu0 0.0
  %146 = vmatprep.subr.mxu0 0.0
  %147 = vmatpush1.msra.mxu0 0.0
  %148 = vmatprep.subr.mxu0 0.0
  %149 = vmatpush1.msra.mxu0 0.0
  %150 = vmatprep.subr.mxu0 0.0
  %151 = vmatpush1.msra.mxu0 0.0
  %152 = vmatprep.subr.mxu0 0.0
  %153 = vmatpush1.msra.mxu0 0.0
  %154 = vmatprep.subr.mxu0 0.0
  %155 = vmatpush1.msra.mxu0 0.0
  %156 = vmatprep.subr.mxu0 0.0
  %157 = vmatpush1.msra.mxu0 0.0
  %158 = vmatprep.subr.mxu0 0.0
  %159 = vmatpush1.msra.mxu0 0.0
  %160 = vmatprep.subr.mxu0 0.0
  %161 = vmatpush1.msra.mxu0 0.0
  %162 = vmatprep.subr.mxu0 0.0
  %163 = vmatpush1.msra.mxu0 0.0
  %164 = vmatprep.subr.mxu0 0.0
  %165 = vmatpush1.msra.mxu0 0.0
  %166 = vmatprep.subr.mxu0 0.0
  %167 = vmatpush1.msra.mxu0 0.0
  %168 = vmatprep.subr.mxu0 0.0
  %169 = vmatpush1.msra.mxu0 0.0
  %170 = vmatprep.subr.mxu0 0.0
  %171 = vmatpush1.msra.mxu0 0.0
  %172 = vmatprep.subr.mxu0 0.0
  %173 = vmatpush1.msra.mxu0 0.0
  %174 = vmatprep.mubr.f32.mxu0 0.0
  %175 = vmatmul.mubr.f32.gmra.mrb[0].mxu0 %v108
  %v176 = vpop.f32.mrb[0].mxu0
  %v177 = vadd.f32 %v105, %v176
  %v178 = vpop.f32.mrb[0].mxu0
  %179 = vdwg.mxu0
  %v180 = vtanh.pop %v177
  %v181 = vld [vmem:[%s1 + $0x58] sm:$0xff]
  %v182 = vld [vmem:[%s1 + $0x60] sm:$0xff]
  %v183 = vld [vmem:[%s1 + $0x68] sm:$0xff]
  %v184 = vld [vmem:[%s1 + $0x70] sm:$0xff]
  %v185 = vld [vmem:[%s1 + $0x78] sm:$0xff]
  %v186 = vld [vmem:[%s1 + $0x80] sm:$0xff]
  %v187 = vld [vmem:[%s1 + $0x88] sm:$0xff]
  %v188 = vld [vmem:[%s1 + $0x90] sm:$0xff]
  %v189 = vld [vmem:[%s1 + $0x98] sm:$0x1]
  %v190 = vlaneseq
  %v191 = vshrl.u32 %v190, 7
  %v192 = vsub.s32 0, %v191
  %v193 = vrot.slane %v189, %v192
  %v195 = vsel %vm106, %v180, 0
  %197 = vmatprep.subr.mxu0 0.0
  %198 = vmatpush1.msra.mxu0 %v181
  %199 = vmatprep.subr.mxu0 0.0
  %200 = vmatpush1.msra.mxu0 %v182
  %201 = vmatprep.subr.mxu0 0.0
  %202 = vmatpush1.msra.mxu0 %v183
  %203 = vmatprep.subr.mxu0 0.0
  %204 = vmatpush1.msra.mxu0 %v184
  %205 = vmatprep.subr.mxu0 0.0
  %206 = vmatpush1.msra.mxu0 %v185
  %207 = vmatprep.subr.mxu0 0.0
  %208 = vmatpush1.msra.mxu0 %v186
  %209 = vmatprep.subr.mxu0 0.0
  %210 = vmatpush1.msra.mxu0 %v187
  %211 = vmatprep.subr.mxu0 0.0
  %212 = vmatpush1.msra.mxu0 %v188
  %213 = vmatprep.subr.mxu0 0.0
  %214 = vmatpush1.msra.mxu0 0.0
  %215 = vmatprep.subr.mxu0 0.0
  %216 = vmatpush1.msra.mxu0 0.0
  %217 = vmatprep.subr.mxu0 0.0
  %218 = vmatpush1.msra.mxu0 0.0
  %219 = vmatprep.subr.mxu0 0.0
  %220 = vmatpush1.msra.mxu0 0.0
  %221 = vmatprep.subr.mxu0 0.0
  %222 = vmatpush1.msra.mxu0 0.0
  %223 = vmatprep.subr.mxu0 0.0
  %224 = vmatpush1.msra.mxu0 0.0
  %225 = vmatprep.subr.mxu0 0.0
  %226 = vmatpush1.msra.mxu0 0.0
  %227 = vmatprep.subr.mxu0 0.0
  %228 = vmatpush1.msra.mxu0 0.0
  %229 = vmatprep.subr.mxu0 0.0
  %230 = vmatpush1.msra.mxu0 0.0
  %231 = vmatprep.subr.mxu0 0.0
  %232 = vmatpush1.msra.mxu0 0.0
  %233 = vmatprep.subr.mxu0 0.0
  %234 = vmatpush1.msra.mxu0 0.0
  %235 = vmatprep.subr.mxu0 0.0
  %236 = vmatpush1.msra.mxu0 0.0
  %237 = vmatprep.subr.mxu0 0.0
  %238 = vmatpush1.msra.mxu0 0.0
  %239 = vmatprep.subr.mxu0 0.0
  %240 = vmatpush1.msra.mxu0 0.0
  %241 = vmatprep.subr.mxu0 0.0
  %242 = vmatpush1.msra.mxu0 0.0
  %243 = vmatprep.subr.mxu0 0.0
  %244 = vmatpush1.msra.mxu0 0.0
  %245 = vmatprep.subr.mxu0 0.0
  %246 = vmatpush1.msra.mxu0 0.0
  %247 = vmatprep.subr.mxu0 0.0
  %248 = vmatpush1.msra.mxu0 0.0
  %249 = vmatprep.subr.mxu0 0.0
  %250 = vmatpush1.msra.mxu0 0.0
  %251 = vmatprep.subr.mxu0 0.0
  %252 = vmatpush1.msra.mxu0 0.0
  %253 = vmatprep.subr.mxu0 0.0
  %254 = vmatpush1.msra.mxu0 0.0
  %255 = vmatprep.subr.mxu0 0.0
  %256 = vmatpush1.msra.mxu0 0.0
  %257 = vmatprep.subr.mxu0 0.0
  %258 = vmatpush1.msra.mxu0 0.0
  %259 = vmatprep.subr.mxu0 0.0
  %260 = vmatpush1.msra.mxu0 0.0
  %261 = vmatprep.mubr.f32.mxu0 0.0
  %262 = vmatmul.mubr.f32.gmra.mrb[0].mxu0 %v195
  %v263 = vpop.f32.mrb[0].mxu0
  %v264 = vadd.f32 %v193, %v263
  %v265 = vpop.f32.mrb[0].mxu0
  %266 = vdwg.mxu0
  %vm267 = vcmask 31744
  %268 = vst.msk [vmem:[%s2] sm:$0xff] %vm267, %v264
  // Predicated region
  $region10: #{tpu_custom_call.1} parent=0 // pred_check
    _
  $region11: #{tpu_custom_call.1} parent=0 // pred_check_branch
    %270 = sbr.rel (0) target = $region13
  $region12: #{tpu_custom_call.1} parent=0 // pred_region
    _
  $region13: #{tpu_custom_call.1} parent=0 // pred_fallthru
    _
  // Predicated region
  $region14: #{tpu_custom_call.1} parent=0 // pred_check
    _
  $region15: #{tpu_custom_call.1} parent=0 // pred_check_branch
    %272 = sbr.rel (0) target = $region17
  $region16: #{tpu_custom_call.1} parent=0 // pred_region
    _
  $region17: #{tpu_custom_call.1} parent=0 // pred_fallthru
    _

</llo_original>
